<compile_context>
chip_gen: v7x
topology: tpu7x:2x2x1
jax: 0.10.0
libtpu: 0.0.40
codegen_flags: <defaults>
</compile_context>

<pallas_src>
import jax
import jax.numpy as jnp
from jax.experimental import pallas as pl
from jax.experimental.pallas import tpu as pltpu


def _deepsets_kernel(obs_ref, w1_ref, b1_ref, w2_ref, b2_ref, pool_ref, out_ref):
    # obs_ref : (TB, obs_dim)   full observation rows for TB batch elements
    # w1_ref  : (obs_dim, N*H)  zero-padded block-diagonal layer-1 weights
    # b1_ref  : (1, N*H)        layer-1 bias tiled over neighbors
    # w2_ref  : (N*H, N*H)      block-diagonal layer-2 weights
    # b2_ref  : (1, N*H)        layer-2 bias tiled over neighbors
    # pool_ref: (N*H, H)        mean-pool matrix (entries 1/N)
    # out_ref : (TB, H)
    x = obs_ref[...]
    h = jnp.tanh(
        jnp.dot(x, w1_ref[...], preferred_element_type=jnp.float32) + b1_ref[...]
    )  # (TB, N*H)
    e = jnp.tanh(
        jnp.dot(h, w2_ref[...], preferred_element_type=jnp.float32) + b2_ref[...]
    )  # (TB, N*H)
    out_ref[...] = jnp.dot(
        e, pool_ref[...], preferred_element_type=jnp.float32
    ).astype(out_ref.dtype)  # (TB, H)


def quad_neighborhood_encoder_deepsets(self_obs, obs, params,
                                       self_obs_dim, neighbor_obs_dim,
                                       neighbor_hidden_size, num_use_neighbor_obs,
                                       *, tile_batch=512):
    """Pallas implementation of QuadNeighborhoodEncoderDeepsets.forward.

    self_obs : [B, self_obs_dim]  (unused by the forward, kept for parity)
    obs      : [B, self_obs_dim + N*D (+ extra)]
    returns  : mean_embed [B, H]  (float32)
    """
    del self_obs  # not used in forward (matches PyTorch module)
    B, obs_dim = obs.shape
    N = num_use_neighbor_obs
    D = neighbor_obs_dim
    H = neighbor_hidden_size
    assert obs_dim >= self_obs_dim + N * D, "obs too narrow for neighbor slice"

    compute_dtype = jnp.float32
    obs = obs.astype(compute_dtype)  # no-op when already f32

    w1 = params["w1"].astype(compute_dtype)              # (D, H)
    b1 = params["b1"].astype(compute_dtype).reshape(-1)  # (H,)
    w2 = params["w2"].astype(compute_dtype)              # (H, H)
    b2 = params["b2"].astype(compute_dtype).reshape(-1)  # (H,)

    # Fold the column slice + per-neighbor MLP into block-diagonal weights so the
    # kernel sees only dense row-slab matmuls (no HBM materialization of the
    # sliced/reshaped neighbor tensor).
    eye_n = jnp.eye(N, dtype=compute_dtype)
    w1_bd = jnp.kron(eye_n, w1)                           # (N*D, N*H)
    w1_full = jnp.zeros((obs_dim, N * H), compute_dtype)
    w1_full = w1_full.at[self_obs_dim:self_obs_dim + N * D, :].set(w1_bd)
    b1_full = jnp.tile(b1, N).reshape(1, N * H)
    w2_full = jnp.kron(eye_n, w2)                         # (N*H, N*H)
    b2_full = jnp.tile(b2, N).reshape(1, N * H)
    pool = jnp.tile(jnp.eye(H, dtype=compute_dtype), (N, 1)) / float(N)  # (N*H, H)

    # Row tiling over the batch: TB is a multiple of 8 (512 default) or the full
    # batch if smaller (full-dim blocks are always legal). Partial last blocks
    # are handled by Pallas masking.
    TB = B if B <= tile_batch else tile_batch
    grid_b = pl.cdiv(B, TB)

    out = pl.pallas_call(
        _deepsets_kernel,
        out_shape=jax.ShapeDtypeStruct((B, H), compute_dtype),
        grid_spec=pltpu.PrefetchScalarGridSpec(
            num_scalar_prefetch=0,
            grid=(grid_b,),
            in_specs=[
                pl.BlockSpec((TB, obs_dim), lambda b: (b, 0)),       # obs rows
                pl.BlockSpec((obs_dim, N * H), lambda b: (0, 0)),    # W1 (resident)
                pl.BlockSpec((1, N * H), lambda b: (0, 0)),          # b1
                pl.BlockSpec((N * H, N * H), lambda b: (0, 0)),      # W2 (resident)
                pl.BlockSpec((1, N * H), lambda b: (0, 0)),          # b2
                pl.BlockSpec((N * H, H), lambda b: (0, 0)),          # mean-pool mat
            ],
            out_specs=pl.BlockSpec((TB, H), lambda b: (b, 0)),
        ),
        compiler_params=pltpu.CompilerParams(
            dimension_semantics=("parallel",)),
    )(obs, w1_full, b1_full, w2_full, b2_full, pool)
    return out


def reference_forward(obs, params, self_obs_dim, D, H, N):
    B = obs.shape[0]
    xn = obs[:, self_obs_dim:self_obs_dim + N * D].reshape(-1, D).astype(jnp.float32)
    h = jnp.tanh(xn @ params["w1"] + params["b1"])
    e = jnp.tanh(h @ params["w2"] + params["b2"])
    return e.reshape(B, N, H).mean(axis=1)


if __name__ == "__main__":
    # Small shapes consistent with the module (quad swarm defaults, scaled down)
    self_obs_dim = 18
    neighbor_obs_dim = 6
    neighbor_hidden_size = 32
    num_use_neighbor_obs = 6
    all_neighbor_obs_size = neighbor_obs_dim * num_use_neighbor_obs
    obs_dim = self_obs_dim + all_neighbor_obs_size

    key = jax.random.PRNGKey(0)
    k_obs, k_self, k_w1, k_b1, k_w2, k_b2, k_obs2 = jax.random.split(key, 7)

    params = {
        "w1": 0.1 * jax.random.normal(k_w1, (neighbor_obs_dim, neighbor_hidden_size), jnp.float32),
        "b1": 0.1 * jax.random.normal(k_b1, (neighbor_hidden_size,), jnp.float32),
        "w2": 0.1 * jax.random.normal(k_w2, (neighbor_hidden_size, neighbor_hidden_size), jnp.float32),
        "b2": 0.1 * jax.random.normal(k_b2, (neighbor_hidden_size,), jnp.float32),
    }

    # --- case 1: tiny batch (single full-batch tile) ---
    batch_size = 4
    obs = jax.random.normal(k_obs, (batch_size, obs_dim), dtype=jnp.float32)
    self_obs = jax.random.normal(k_self, (batch_size, self_obs_dim), dtype=jnp.float32)

    mean_embed = quad_neighborhood_encoder_deepsets(
        self_obs, obs, params,
        self_obs_dim, neighbor_obs_dim, neighbor_hidden_size, num_use_neighbor_obs)
    mean_embed = jax.block_until_ready(mean_embed)

    ref = reference_forward(obs, params, self_obs_dim, neighbor_obs_dim,
                            neighbor_hidden_size, num_use_neighbor_obs)
    assert mean_embed.shape == (batch_size, neighbor_hidden_size)
    assert jnp.allclose(mean_embed, ref, atol=1e-5, rtol=1e-5)

    # --- case 2: multi-tile grid (exercises TB multiple-of-8 row tiling) ---
    batch_size2 = 16
    obs2 = jax.random.normal(k_obs2, (batch_size2, obs_dim), dtype=jnp.float32)
    self_obs2 = jnp.zeros((batch_size2, self_obs_dim), jnp.float32)
    mean_embed2 = quad_neighborhood_encoder_deepsets(
        self_obs2, obs2, params,
        self_obs_dim, neighbor_obs_dim, neighbor_hidden_size, num_use_neighbor_obs,
        tile_batch=8)
    mean_embed2 = jax.block_until_ready(mean_embed2)
    ref2 = reference_forward(obs2, params, self_obs_dim, neighbor_obs_dim,
                             neighbor_hidden_size, num_use_neighbor_obs)
    assert jnp.allclose(mean_embed2, ref2, atol=1e-5, rtol=1e-5)

    print("KERNEL_OK")
</pallas_src>

<mosaic_0001>
module attributes {stable_mosaic.version = 11 : i64} {
  func.func @_deepsets_kernel(%arg0: i32, %arg1: memref<4x54xf32, #tpu.memory_space<vmem>>, %arg2: memref<54x192xf32, #tpu.memory_space<vmem>>, %arg3: memref<1x192xf32, #tpu.memory_space<vmem>>, %arg4: memref<192x192xf32, #tpu.memory_space<vmem>>, %arg5: memref<1x192xf32, #tpu.memory_space<vmem>>, %arg6: memref<192x32xf32, #tpu.memory_space<vmem>>, %arg7: memref<4x32xf32, #tpu.memory_space<vmem>>) attributes {dimension_semantics = [#tpu.dimension_semantics<parallel>], iteration_bounds = array<i64: 1>, scalar_prefetch = 0 : i64, scratch_operands = 0 : i64, tpu.core_type = #tpu.core_type<tc>, window_params = [{transform_indices = @transform_0, window_bounds = array<i64: 4, 54>}, {pipeline_mode = #tpu.pipeline_mode<synchronous>, transform_indices = @transform_1, window_bounds = array<i64: 54, 192>}, {pipeline_mode = #tpu.pipeline_mode<synchronous>, transform_indices = @transform_2, window_bounds = array<i64: 1, 192>}, {pipeline_mode = #tpu.pipeline_mode<synchronous>, transform_indices = @transform_3, window_bounds = array<i64: 192, 192>}, {pipeline_mode = #tpu.pipeline_mode<synchronous>, transform_indices = @transform_4, window_bounds = array<i64: 1, 192>}, {pipeline_mode = #tpu.pipeline_mode<synchronous>, transform_indices = @transform_5, window_bounds = array<i64: 192, 32>}, {transform_indices = @transform_6, window_bounds = array<i64: 4, 32>}]} {
    %c0 = arith.constant 0 : index
    %c0_0 = arith.constant 0 : index
    %0 = vector.load %arg1[%c0, %c0_0] : memref<4x54xf32, #tpu.memory_space<vmem>>, vector<4x54xf32>
    %c0_1 = arith.constant 0 : index
    %c0_2 = arith.constant 0 : index
    %1 = vector.load %arg2[%c0_1, %c0_2] : memref<54x192xf32, #tpu.memory_space<vmem>>, vector<54x192xf32>
    %cst = arith.constant dense<0.000000e+00> : vector<4x192xf32>
    %2 = tpu.matmul %0, %1, %cst {dimension_numbers = #tpu.dot_dimension_numbers<[1], [0], [0], [1], [0, 0, 1, 1], [], []>} : vector<4x54xf32>, vector<54x192xf32>, vector<4x192xf32> -> vector<4x192xf32>
    %c0_3 = arith.constant 0 : index
    %c0_4 = arith.constant 0 : index
    %3 = vector.load %arg3[%c0_3, %c0_4] : memref<1x192xf32, #tpu.memory_space<vmem>>, vector<1x192xf32>
    %4 = vector.broadcast %3 : vector<1x192xf32> to vector<4x192xf32>
    %5 = arith.addf %2, %4 : vector<4x192xf32>
    %6 = math.tanh %5 : vector<4x192xf32>
    %c0_5 = arith.constant 0 : index
    %c0_6 = arith.constant 0 : index
    %7 = vector.load %arg4[%c0_5, %c0_6] : memref<192x192xf32, #tpu.memory_space<vmem>>, vector<192x192xf32>
    %cst_7 = arith.constant dense<0.000000e+00> : vector<4x192xf32>
    %8 = tpu.matmul %6, %7, %cst_7 {dimension_numbers = #tpu.dot_dimension_numbers<[1], [0], [0], [1], [0, 0, 1, 1], [], []>} : vector<4x192xf32>, vector<192x192xf32>, vector<4x192xf32> -> vector<4x192xf32>
    %c0_8 = arith.constant 0 : index
    %c0_9 = arith.constant 0 : index
    %9 = vector.load %arg5[%c0_8, %c0_9] : memref<1x192xf32, #tpu.memory_space<vmem>>, vector<1x192xf32>
    %10 = vector.broadcast %9 : vector<1x192xf32> to vector<4x192xf32>
    %11 = arith.addf %8, %10 : vector<4x192xf32>
    %12 = math.tanh %11 : vector<4x192xf32>
    %c0_10 = arith.constant 0 : index
    %c0_11 = arith.constant 0 : index
    %13 = vector.load %arg6[%c0_10, %c0_11] : memref<192x32xf32, #tpu.memory_space<vmem>>, vector<192x32xf32>
    %cst_12 = arith.constant dense<0.000000e+00> : vector<4x32xf32>
    %14 = tpu.matmul %12, %13, %cst_12 {dimension_numbers = #tpu.dot_dimension_numbers<[1], [0], [0], [1], [0, 0, 1, 1], [], []>} : vector<4x192xf32>, vector<192x32xf32>, vector<4x32xf32> -> vector<4x32xf32>
    %c0_13 = arith.constant 0 : index
    %c0_14 = arith.constant 0 : index
    %15 = vector.load %arg7[%c0_13, %c0_14] : memref<4x32xf32, #tpu.memory_space<vmem>>, vector<4x32xf32>
    tpu.vector_store %arg7[%c0_13, %c0_14], %14 {strides = array<i32>} : memref<4x32xf32, #tpu.memory_space<vmem>>, vector<4x32xf32>,
    return
  }
  func.func @transform_0(%arg0: i32) -> (i32, i32) {
    %c0_i32 = arith.constant 0 : i32
    %c0_i32_0 = arith.constant 0 : i32
    return %arg0, %c0_i32 : i32, i32
  }
  func.func @transform_1(%arg0: i32) -> (i32, i32) {
    %c0_i32 = arith.constant 0 : i32
    %c0_i32_0 = arith.constant 0 : i32
    %c0_i32_1 = arith.constant 0 : i32
    return %c0_i32, %c0_i32_0 : i32, i32
  }
  func.func @transform_2(%arg0: i32) -> (i32, i32) {
    %c0_i32 = arith.constant 0 : i32
    %c0_i32_0 = arith.constant 0 : i32
    %c0_i32_1 = arith.constant 0 : i32
    return %c0_i32, %c0_i32_0 : i32, i32
  }
  func.func @transform_3(%arg0: i32) -> (i32, i32) {
    %c0_i32 = arith.constant 0 : i32
    %c0_i32_0 = arith.constant 0 : i32
    %c0_i32_1 = arith.constant 0 : i32
    return %c0_i32, %c0_i32_0 : i32, i32
  }
  func.func @transform_4(%arg0: i32) -> (i32, i32) {
    %c0_i32 = arith.constant 0 : i32
    %c0_i32_0 = arith.constant 0 : i32
    %c0_i32_1 = arith.constant 0 : i32
    return %c0_i32, %c0_i32_0 : i32, i32
  }
  func.func @transform_5(%arg0: i32) -> (i32, i32) {
    %c0_i32 = arith.constant 0 : i32
    %c0_i32_0 = arith.constant 0 : i32
    %c0_i32_1 = arith.constant 0 : i32
    return %c0_i32, %c0_i32_0 : i32, i32
  }
  func.func @transform_6(%arg0: i32) -> (i32, i32) {
    %c0_i32 = arith.constant 0 : i32
    %c0_i32_0 = arith.constant 0 : i32
    return %arg0, %c0_i32 : i32, i32
  }
}

</mosaic_0001>

<llo_original>
// kernel: tpu_custom_call.1
$region0: #{tpu_custom_call.1}
  #allocation0 [shape = 'u32[]', space=smem, size = 0x4, offset = 0x4, fixed_abs, tag = 'smem constant byte address 0x4 - core index']
  #allocation1 [shape = 'u32[144,128]{1,0:T(1,128)}', space=vmem, size = 0x12000, scoped, tag = 'internal scratch']
  %s0 = inlined_call_operand.vmem [shape: f32[4,54], index: 0, kind: input, shape index: {}]
  %s1 = inlined_call_operand.vmem [shape: f32[54,192], index: 1, kind: input, shape index: {}]
  %s2 = inlined_call_operand.vmem [shape: f32[1,192], index: 2, kind: input, shape index: {}]
  %s3 = inlined_call_operand.hbm [shape: f32[192,192], index: 3, kind: input, shape index: {}]
  %s4 = inlined_call_operand.vmem [shape: f32[1,192], index: 4, kind: input, shape index: {}]
  %s5 = inlined_call_operand.vmem [shape: f32[192,32], index: 5, kind: input, shape index: {}]
  %s6 = inlined_call_operand.hbm [shape: f32[4,32], index: 6, kind: output, shape index: {}]
  %s7 = sld [smem:[#allocation0]]
  $region38: #{tpu_custom_call.1} parent=0
    _
  %s9 = ssub.s32 1, %s7
  %s10 = scalar_select 0, %s9, %s7
  $region1: #{tpu_custom_call.1} parent=0
    #allocation2 [shape = 'u8[196608]{0}', space=vmem, size = 0x30000, scoped, tag = 'input window, operand 3, single buffered']
    #allocation3 [shape = 's32[1]{0}', space=sflag, size = 0x4, scoped, tag = 'scoped memory for tpu_custom_call.1']
    #allocation4 [shape = 's32[1]{0}', space=sflag, size = 0x4, scoped, tag = 'scoped memory for tpu_custom_call.1']
    #allocation5 [shape = 'u8[2048]{0}', space=vmem, size = 0x800, scoped, tag = 'output window, operand 0, single buffered']
    %11 = vsyncpa [#allocation3], 0
    %12 = vsyncpa [#allocation4], 0
    // Predicated region
    $region2: #{tpu_custom_call.1} parent=1 // pred_check
      _
    $region3: #{tpu_custom_call.1} parent=1 // pred_check_branch
      %14 = sbr.rel (0) target = $region5
    $region4: #{tpu_custom_call.1} parent=1 // pred_region
      _
    $region5: #{tpu_custom_call.1} parent=1 // pred_fallthru
      _
    // Predicated region
    $region6: #{tpu_custom_call.1} parent=1 // pred_check
      _
    $region7: #{tpu_custom_call.1} parent=1 // pred_check_branch
      %16 = sbr.rel (0) target = $region9
    $region8: #{tpu_custom_call.1} parent=1 // pred_region
      _
    $region9: #{tpu_custom_call.1} parent=1 // pred_fallthru
      _
    // Predicated region
    $region10: #{tpu_custom_call.1} parent=1 // pred_check
      _
    $region11: #{tpu_custom_call.1} parent=1 // pred_check_branch
      %18 = sbr.rel (0) target = $region13
    $region12: #{tpu_custom_call.1} parent=1 // pred_region
      _
    $region13: #{tpu_custom_call.1} parent=1 // pred_fallthru
      _
    // Predicated region
    $region14: #{tpu_custom_call.1} parent=1 // pred_check
      _
    $region15: #{tpu_custom_call.1} parent=1 // pred_check_branch
      %20 = sbr.rel (0) target = $region17
    $region16: #{tpu_custom_call.1} parent=1 // pred_region
      %s22 = ssub.s32 6144, 6144
      %23 = vsyncadd [#allocation3], %s22
      %s24 = sshll.u32 [#allocation2], 4
      %s25 = int_to_ptr.vmem [resolvable:$true] %s24
      %30 = dma.hbm_to_vmem [thread:$0]  %s3, 6144, %s25, [#allocation3], 256, 256, 16
    $region17: #{tpu_custom_call.1} parent=1 // pred_fallthru
      _
    // Predicated region
    $region18: #{tpu_custom_call.1} parent=1 // pred_check
      _
    $region19: #{tpu_custom_call.1} parent=1 // pred_check_branch
      %32 = sbr.rel (0) target = $region21
    $region20: #{tpu_custom_call.1} parent=1 // pred_region
      _
    $region21: #{tpu_custom_call.1} parent=1 // pred_fallthru
      _
    // Predicated region
    $region22: #{tpu_custom_call.1} parent=1 // pred_check
      _
    $region23: #{tpu_custom_call.1} parent=1 // pred_check_branch
      %34 = sbr.rel (0) target = $region25
    $region24: #{tpu_custom_call.1} parent=1 // pred_region
      _
    $region25: #{tpu_custom_call.1} parent=1 // pred_fallthru
      _
    // Predicated region
    $region26: #{tpu_custom_call.1} parent=1 // pred_check
      _
    $region27: #{tpu_custom_call.1} parent=1 // pred_check_branch
      %36 = sbr.rel (0) target = $region29
    $region28: #{tpu_custom_call.1} parent=1 // pred_region
      %37 = dma.done [#allocation3], 6144
    $region29: #{tpu_custom_call.1} parent=1 // pred_fallthru
      _
    %v38 = vld [vmem:[%s0] sm:$0xf]
    %v39 = vld [vmem:[%s1] sm:$0xff]
    %v40 = vld [vmem:[%s1 + $0x8] sm:$0xff]
    %v41 = vld [vmem:[%s1 + $0x10] sm:$0xff]
    %v42 = vld [vmem:[%s1 + $0x18] sm:$0xff]
    %v43 = vld [vmem:[%s1 + $0x20] sm:$0xff]
    %v44 = vld [vmem:[%s1 + $0x28] sm:$0xff]
    %v45 = vld [vmem:[%s1 + $0x30] sm:$0xff]
    %v46 = vld [vmem:[%s1 + $0x38] sm:$0xff]
    %v47 = vld [vmem:[%s1 + $0x40] sm:$0xff]
    %v48 = vld [vmem:[%s1 + $0x48] sm:$0xff]
    %v49 = vld [vmem:[%s1 + $0x50] sm:$0xff]
    %v50 = vld [vmem:[%s1 + $0x58] sm:$0xff]
    %v51 = vld [vmem:[%s1 + $0x60] sm:$0x3f]
    %v52 = vld [vmem:[%s1 + $0x68] sm:$0x3f]
    %v53 = vld [vmem:[%s2] sm:$0x3]
    %v55 = vlaneseq
    %v56 = vshrl.u32 %v55, 7
    %v57 = vsub.s32 0, %v56
    %v58 = vrot.slane %v53, %v57
    %v59 = vlaneseq
    %v60 = vshrl.u32 %v59, 7
    %v61 = vsub.s32 1, %v60
    %v62 = vrot.slane %v53, %v61
    %vm65 = vcmask 441344
    %v67 = vsel %vm65, %v38, 0
    %vm69 = vcmask 1045504
    %v71 = vsel %vm69, %v51, 0
    %v74 = vsel %vm69, %v52, 0
    %76 = vmatprep.subr.mxu0 %v40
    %77 = vmatpush1.msra.mxu0 %v39
    %78 = vmatprep.subr.mxu0 %v42
    %79 = vmatpush1.msra.mxu0 %v41
    %80 = vmatprep.subr.mxu0 %v44
    %81 = vmatpush1.msra.mxu0 %v43
    %82 = vmatprep.subr.mxu0 %v46
    %83 = vmatpush1.msra.mxu0 %v45
    %84 = vmatprep.subr.mxu0 %v48
    %85 = vmatpush1.msra.mxu0 %v47
    %86 = vmatprep.subr.mxu0 %v50
    %87 = vmatpush1.msra.mxu0 %v49
    %88 = vmatprep.subr.mxu0 %v74
    %89 = vmatpush1.msra.mxu0 %v71
    %90 = vmatprep.subr.mxu0 0.0
    %91 = vmatpush1.msra.mxu0 0.0
    %92 = vmatprep.subr.mxu0 0.0
    %93 = vmatpush1.msra.mxu0 0.0
    %94 = vmatprep.subr.mxu0 0.0
    %95 = vmatpush1.msra.mxu0 0.0
    %96 = vmatprep.subr.mxu0 0.0
    %97 = vmatpush1.msra.mxu0 0.0
    %98 = vmatprep.subr.mxu0 0.0
    %99 = vmatpush1.msra.mxu0 0.0
    %100 = vmatprep.subr.mxu0 0.0
    %101 = vmatpush1.msra.mxu0 0.0
    %102 = vmatprep.subr.mxu0 0.0
    %103 = vmatpush1.msra.mxu0 0.0
    %104 = vmatprep.subr.mxu0 0.0
    %105 = vmatpush1.msra.mxu0 0.0
    %106 = vmatprep.subr.mxu0 0.0
    %107 = vmatpush1.msra.mxu0 0.0
    %108 = vmatprep.subr.mxu0 0.0
    %109 = vmatpush1.msra.mxu0 0.0
    %110 = vmatprep.subr.mxu0 0.0
    %111 = vmatpush1.msra.mxu0 0.0
    %112 = vmatprep.subr.mxu0 0.0
    %113 = vmatpush1.msra.mxu0 0.0
    %114 = vmatprep.subr.mxu0 0.0
    %115 = vmatpush1.msra.mxu0 0.0
    %116 = vmatprep.subr.mxu0 0.0
    %117 = vmatpush1.msra.mxu0 0.0
    %118 = vmatprep.subr.mxu0 0.0
    %119 = vmatpush1.msra.mxu0 0.0
    %120 = vmatprep.subr.mxu0 0.0
    %121 = vmatpush1.msra.mxu0 0.0
    %122 = vmatprep.subr.mxu0 0.0
    %123 = vmatpush1.msra.mxu0 0.0
    %124 = vmatprep.subr.mxu0 0.0
    %125 = vmatpush1.msra.mxu0 0.0
    %126 = vmatprep.subr.mxu0 0.0
    %127 = vmatpush1.msra.mxu0 0.0
    %128 = vmatprep.subr.mxu0 0.0
    %129 = vmatpush1.msra.mxu0 0.0
    %130 = vmatprep.subr.mxu0 0.0
    %131 = vmatpush1.msra.mxu0 0.0
    %132 = vmatprep.subr.mxu0 0.0
    %133 = vmatpush1.msra.mxu0 0.0
    %134 = vmatprep.subr.mxu0 0.0
    %135 = vmatpush1.msra.mxu0 0.0
    %136 = vmatprep.subr.mxu0 0.0
    %137 = vmatpush1.msra.mxu0 0.0
    %138 = vmatprep.subr.mxu0 0.0
    %139 = vmatpush1.msra.mxu0 0.0
    %140 = vmatprep.mubr.f32.mxu0 0.0
    %141 = vmatmul.mubr.f32.gmra.mrb[0].mxu0 %v67
    %v142 = vpop.f32.mrb[0].mxu0
    %v143 = vadd.f32 %v58, %v142
    %v144 = vpop.f32.mrb[0].mxu0
    %v145 = vadd.f32 %v62, %v144
    %146 = vdwg.mxu0
    %v147 = vtanh.pop %v143
    %v148 = vtanh.pop %v145
    %v149 = vld [vmem:[#allocation2] sm:$0xff]
    %v150 = vld [vmem:[#allocation2 + $0x8] sm:$0xff]
    %v151 = vld [vmem:[#allocation2 + $0x10] sm:$0xff]
    %v152 = vld [vmem:[#allocation2 + $0x18] sm:$0xff]
    %v153 = vld [vmem:[#allocation2 + $0x20] sm:$0xff]
    %v154 = vld [vmem:[#allocation2 + $0x28] sm:$0xff]
    %v155 = vld [vmem:[#allocation2 + $0x30] sm:$0xff]
    %v156 = vld [vmem:[#allocation2 + $0x38] sm:$0xff]
    %v157 = vld [vmem:[#allocation2 + $0x40] sm:$0xff]
    %v158 = vld [vmem:[#allocation2 + $0x48] sm:$0xff]
    %v159 = vld [vmem:[#allocation2 + $0x50] sm:$0xff]
    %v160 = vld [vmem:[#allocation2 + $0x58] sm:$0xff]
    %v161 = vld [vmem:[#allocation2 + $0x60] sm:$0xff]
    %v162 = vld [vmem:[#allocation2 + $0x68] sm:$0xff]
    %v163 = vld [vmem:[#allocation2 + $0x70] sm:$0xff]
    %v164 = vld [vmem:[#allocation2 + $0x78] sm:$0xff]
    %v165 = vld [vmem:[#allocation2 + $0x80] sm:$0xff]
    %v166 = vld [vmem:[#allocation2 + $0x88] sm:$0xff]
    %v167 = vld [vmem:[#allocation2 + $0x90] sm:$0xff]
    %v168 = vld [vmem:[#allocation2 + $0x98] sm:$0xff]
    %v169 = vld [vmem:[#allocation2 + $0xa0] sm:$0xff]
    %v170 = vld [vmem:[#allocation2 + $0xa8] sm:$0xff]
    %v171 = vld [vmem:[#allocation2 + $0xb0] sm:$0xff]
    %v172 = vld [vmem:[#allocation2 + $0xb8] sm:$0xff]
    %v173 = vld [vmem:[#allocation2 + $0xc0] sm:$0xff]
    %v174 = vld [vmem:[#allocation2 + $0xc8] sm:$0xff]
    %v175 = vld [vmem:[#allocation2 + $0xd0] sm:$0xff]
    %v176 = vld [vmem:[#allocation2 + $0xd8] sm:$0xff]
    %v177 = vld [vmem:[#allocation2 + $0xe0] sm:$0xff]
    %v178 = vld [vmem:[#allocation2 + $0xe8] sm:$0xff]
    %v179 = vld [vmem:[#allocation2 + $0xf0] sm:$0xff]
    %v180 = vld [vmem:[#allocation2 + $0xf8] sm:$0xff]
    %v181 = vld [vmem:[#allocation2 + $0x100] sm:$0xff]
    %v182 = vld [vmem:[#allocation2 + $0x108] sm:$0xff]
    %v183 = vld [vmem:[#allocation2 + $0x110] sm:$0xff]
    %v184 = vld [vmem:[#allocation2 + $0x118] sm:$0xff]
    %v185 = vld [vmem:[#allocation2 + $0x120] sm:$0xff]
    %v186 = vld [vmem:[#allocation2 + $0x128] sm:$0xff]
    %v187 = vld [vmem:[#allocation2 + $0x130] sm:$0xff]
    %v188 = vld [vmem:[#allocation2 + $0x138] sm:$0xff]
    %v189 = vld [vmem:[#allocation2 + $0x140] sm:$0xff]
    %v190 = vld [vmem:[#allocation2 + $0x148] sm:$0xff]
    %v191 = vld [vmem:[#allocation2 + $0x150] sm:$0xff]
    %v192 = vld [vmem:[#allocation2 + $0x158] sm:$0xff]
    %v193 = vld [vmem:[#allocation2 + $0x160] sm:$0xff]
    %v194 = vld [vmem:[#allocation2 + $0x168] sm:$0xff]
    %v195 = vld [vmem:[#allocation2 + $0x170] sm:$0xff]
    %v196 = vld [vmem:[#allocation2 + $0x178] sm:$0xff]
    %v197 = vld [vmem:[%s4] sm:$0x3]
    %v199 = vlaneseq
    %v200 = vshrl.u32 %v199, 7
    %v201 = vsub.s32 0, %v200
    %v202 = vrot.slane %v197, %v201
    %v203 = vlaneseq
    %v204 = vshrl.u32 %v203, 7
    %v205 = vsub.s32 1, %v204
    %v206 = vrot.slane %v197, %v205
    %vm209 = vcmask 523264
    %v211 = vsel %vm209, %v148, 0
    %213 = vmatprep.subr.mxu0 %v150
    %214 = vmatpush1.msra.mxu0 %v149
    %215 = vmatprep.subr.mxu0 %v152
    %216 = vmatpush1.msra.mxu0 %v151
    %217 = vmatprep.subr.mxu0 %v154
    %218 = vmatpush1.msra.mxu0 %v153
    %219 = vmatprep.subr.mxu0 %v156
    %220 = vmatpush1.msra.mxu0 %v155
    %221 = vmatprep.subr.mxu0 %v158
    %222 = vmatpush1.msra.mxu0 %v157
    %223 = vmatprep.subr.mxu0 %v160
    %224 = vmatpush1.msra.mxu0 %v159
    %225 = vmatprep.subr.mxu0 %v162
    %226 = vmatpush1.msra.mxu0 %v161
    %227 = vmatprep.subr.mxu0 %v164
    %228 = vmatpush1.msra.mxu0 %v163
    %229 = vmatprep.subr.mxu0 %v166
    %230 = vmatpush1.msra.mxu0 %v165
    %231 = vmatprep.subr.mxu0 %v168
    %232 = vmatpush1.msra.mxu0 %v167
    %233 = vmatprep.subr.mxu0 %v170
    %234 = vmatpush1.msra.mxu0 %v169
    %235 = vmatprep.subr.mxu0 %v172
    %236 = vmatpush1.msra.mxu0 %v171
    %237 = vmatprep.subr.mxu0 %v174
    %238 = vmatpush1.msra.mxu0 %v173
    %239 = vmatprep.subr.mxu0 %v176
    %240 = vmatpush1.msra.mxu0 %v175
    %241 = vmatprep.subr.mxu0 %v178
    %242 = vmatpush1.msra.mxu0 %v177
    %243 = vmatprep.subr.mxu0 %v180
    %244 = vmatpush1.msra.mxu0 %v179
    %245 = vmatprep.subr.mxu0 %v182
    %246 = vmatpush1.msra.mxu0 %v181
    %247 = vmatprep.subr.mxu0 %v184
    %248 = vmatpush1.msra.mxu0 %v183
    %249 = vmatprep.subr.mxu0 %v186
    %250 = vmatpush1.msra.mxu0 %v185
    %251 = vmatprep.subr.mxu0 %v188
    %252 = vmatpush1.msra.mxu0 %v187
    %253 = vmatprep.subr.mxu0 %v190
    %254 = vmatpush1.msra.mxu0 %v189
    %255 = vmatprep.subr.mxu0 %v192
    %256 = vmatpush1.msra.mxu0 %v191
    %257 = vmatprep.subr.mxu0 %v194
    %258 = vmatpush1.msra.mxu0 %v193
    %259 = vmatprep.subr.mxu0 %v196
    %260 = vmatpush1.msra.mxu0 %v195
    %261 = vmatprep.subr.mxu0 0.0
    %262 = vmatpush1.msra.mxu0 0.0
    %263 = vmatprep.subr.mxu0 0.0
    %264 = vmatpush1.msra.mxu0 0.0
    %265 = vmatprep.subr.mxu0 0.0
    %266 = vmatpush1.msra.mxu0 0.0
    %267 = vmatprep.subr.mxu0 0.0
    %268 = vmatpush1.msra.mxu0 0.0
    %269 = vmatprep.subr.mxu0 0.0
    %270 = vmatpush1.msra.mxu0 0.0
    %271 = vmatprep.subr.mxu0 0.0
    %272 = vmatpush1.msra.mxu0 0.0
    %273 = vmatprep.subr.mxu0 0.0
    %274 = vmatpush1.msra.mxu0 0.0
    %275 = vmatprep.subr.mxu0 0.0
    %276 = vmatpush1.msra.mxu0 0.0
    %277 = vmatprep.mubr.f32.mxu0 %v211
    %278 = vmatmul.mubr.f32.gmra.mrb[0].mxu0 %v147
    %v279 = vpop.f32.mrb[0].mxu0
    %v280 = vadd.f32 %v202, %v279
    %v281 = vpop.f32.mrb[0].mxu0
    %v282 = vadd.f32 %v206, %v281
    %283 = vdwg.mxu0
    %v284 = vtanh.pop %v280
    %v285 = vtanh.pop %v282
    %v286 = vld [vmem:[%s5] sm:$0xff]
    %v287 = vld [vmem:[%s5 + $0x8] sm:$0xff]
    %v288 = vld [vmem:[%s5 + $0x10] sm:$0xff]
    %v289 = vld [vmem:[%s5 + $0x18] sm:$0xff]
    %v290 = vld [vmem:[%s5 + $0x20] sm:$0xff]
    %v291 = vld [vmem:[%s5 + $0x28] sm:$0xff]
    %v292 = vld [vmem:[%s5 + $0x30] sm:$0xff]
    %v293 = vld [vmem:[%s5 + $0x38] sm:$0xff]
    %v294 = vld [vmem:[%s5 + $0x40] sm:$0xff]
    %v295 = vld [vmem:[%s5 + $0x48] sm:$0xff]
    %v296 = vld [vmem:[%s5 + $0x50] sm:$0xff]
    %v297 = vld [vmem:[%s5 + $0x58] sm:$0xff]
    %v298 = vld [vmem:[%s5 + $0x60] sm:$0xff]
    %v299 = vld [vmem:[%s5 + $0x68] sm:$0xff]
    %v300 = vld [vmem:[%s5 + $0x70] sm:$0xff]
    %v301 = vld [vmem:[%s5 + $0x78] sm:$0xff]
    %v302 = vld [vmem:[%s5 + $0x80] sm:$0xff]
    %v303 = vld [vmem:[%s5 + $0x88] sm:$0xff]
    %v304 = vld [vmem:[%s5 + $0x90] sm:$0xff]
    %v305 = vld [vmem:[%s5 + $0x98] sm:$0xff]
    %v306 = vld [vmem:[%s5 + $0xa0] sm:$0xff]
    %v307 = vld [vmem:[%s5 + $0xa8] sm:$0xff]
    %v308 = vld [vmem:[%s5 + $0xb0] sm:$0xff]
    %v309 = vld [vmem:[%s5 + $0xb8] sm:$0xff]
    %v311 = vsel %vm209, %v285, 0
    %313 = vmatprep.subr.mxu0 0.0
    %314 = vmatpush1.msra.mxu0 %v286
    %315 = vmatprep.subr.mxu0 0.0
    %316 = vmatpush1.msra.mxu0 %v287
    %317 = vmatprep.subr.mxu0 0.0
    %318 = vmatpush1.msra.mxu0 %v288
    %319 = vmatprep.subr.mxu0 0.0
    %320 = vmatpush1.msra.mxu0 %v289
    %321 = vmatprep.subr.mxu0 0.0
    %322 = vmatpush1.msra.mxu0 %v290
    %323 = vmatprep.subr.mxu0 0.0
    %324 = vmatpush1.msra.mxu0 %v291
    %325 = vmatprep.subr.mxu0 0.0
    %326 = vmatpush1.msra.mxu0 %v292
    %327 = vmatprep.subr.mxu0 0.0
    %328 = vmatpush1.msra.mxu0 %v293
    %329 = vmatprep.subr.mxu0 0.0
    %330 = vmatpush1.msra.mxu0 %v294
    %331 = vmatprep.subr.mxu0 0.0
    %332 = vmatpush1.msra.mxu0 %v295
    %333 = vmatprep.subr.mxu0 0.0
    %334 = vmatpush1.msra.mxu0 %v296
    %335 = vmatprep.subr.mxu0 0.0
    %336 = vmatpush1.msra.mxu0 %v297
    %337 = vmatprep.subr.mxu0 0.0
    %338 = vmatpush1.msra.mxu0 %v298
    %339 = vmatprep.subr.mxu0 0.0
    %340 = vmatpush1.msra.mxu0 %v299
    %341 = vmatprep.subr.mxu0 0.0
    %342 = vmatpush1.msra.mxu0 %v300
    %343 = vmatprep.subr.mxu0 0.0
    %344 = vmatpush1.msra.mxu0 %v301
    %345 = vmatprep.subr.mxu0 0.0
    %346 = vmatpush1.msra.mxu0 %v302
    %347 = vmatprep.subr.mxu0 0.0
    %348 = vmatpush1.msra.mxu0 %v303
    %349 = vmatprep.subr.mxu0 0.0
    %350 = vmatpush1.msra.mxu0 %v304
    %351 = vmatprep.subr.mxu0 0.0
    %352 = vmatpush1.msra.mxu0 %v305
    %353 = vmatprep.subr.mxu0 0.0
    %354 = vmatpush1.msra.mxu0 %v306
    %355 = vmatprep.subr.mxu0 0.0
    %356 = vmatpush1.msra.mxu0 %v307
    %357 = vmatprep.subr.mxu0 0.0
    %358 = vmatpush1.msra.mxu0 %v308
    %359 = vmatprep.subr.mxu0 0.0
    %360 = vmatpush1.msra.mxu0 %v309
    %361 = vmatprep.subr.mxu0 0.0
    %362 = vmatpush1.msra.mxu0 0.0
    %363 = vmatprep.subr.mxu0 0.0
    %364 = vmatpush1.msra.mxu0 0.0
    %365 = vmatprep.subr.mxu0 0.0
    %366 = vmatpush1.msra.mxu0 0.0
    %367 = vmatprep.subr.mxu0 0.0
    %368 = vmatpush1.msra.mxu0 0.0
    %369 = vmatprep.subr.mxu0 0.0
    %370 = vmatpush1.msra.mxu0 0.0
    %371 = vmatprep.subr.mxu0 0.0
    %372 = vmatpush1.msra.mxu0 0.0
    %373 = vmatprep.subr.mxu0 0.0
    %374 = vmatpush1.msra.mxu0 0.0
    %375 = vmatprep.subr.mxu0 0.0
    %376 = vmatpush1.msra.mxu0 0.0
    %377 = vmatprep.mubr.f32.mxu0 %v311
    %378 = vmatmul.mubr.f32.gmra.mrb[0].mxu0 %v284
    %v379 = vpop.f32.mrb[0].mxu0
    %v380 = vadd.f32 0.0, %v379
    %v381 = vpop.f32.mrb[0].mxu0
    %382 = vdwg.mxu0
    %vm383 = vcmask 257024
    %384 = vst.msk [vmem:[#allocation5] sm:$0xf] %vm383, %v380
    // Predicated region
    $region30: #{tpu_custom_call.1} parent=1 // pred_check
      _
    $region31: #{tpu_custom_call.1} parent=1 // pred_check_branch
      %386 = sbr.rel (0) target = $region33
    $region32: #{tpu_custom_call.1} parent=1 // pred_region
      %s388 = ssub.s32 64, 64
      %389 = vsyncadd [#allocation4], %s388
      %s391 = sshll.u32 [#allocation5], 4
      %s392 = int_to_ptr.vmem [resolvable:$true] %s391
      %394 = dma.vmem_to_hbm [thread:$0]  %s392, 64, %s6, [#allocation4]
    $region33: #{tpu_custom_call.1} parent=1 // pred_fallthru
      _
    // Predicated region
    $region34: #{tpu_custom_call.1} parent=1 // pred_check
      _
    $region35: #{tpu_custom_call.1} parent=1 // pred_check_branch
      %396 = sbr.rel (0) target = $region37
    $region36: #{tpu_custom_call.1} parent=1 // pred_region
      %397 = dma.done [#allocation4], 64
    $region37: #{tpu_custom_call.1} parent=1 // pred_fallthru
      _
    %398 = vsyncpa [#allocation3], 1
    %399 = vsyncpa [#allocation4], 1

</llo_original>
